<compile_context>
chip_gen: v6e
topology: v6e:2x2x1
jax: 0.10.0
libtpu: 0.0.40
codegen_flags: <defaults>
</compile_context>

<pallas_src>
import functools

import numpy as np
import jax
import jax.numpy as jnp
from jax.experimental import pallas as pl
from jax.experimental.pallas import tpu as pltpu


_VMEM_LIMIT = 48 * 1024 * 1024


# ----------------------------------------------------------------------------
# Pallas kernels
# ----------------------------------------------------------------------------
def _deconv1_kernel(q_ref, w_ref, b_ref, h_ref, hsum_ref, hsq_ref):
    """deconv1(relu(bn1(x))) as ONE lane-dense MXU matmul + BN2-stat epilogue.

    q_ref:    (rows, KP)        bf16  tap-fused BN1+ReLU input rows
    w_ref:    (KP, 4W*Cout)     bf16  folded deconv1 weights (both row parities)
    b_ref:    (1, 4W*Cout)      f32   lane-tiled bias
    h_ref:    (rows, 4W*Cout)   bf16  h, row-parity fused into lanes [p0|p1]
    hsum_ref: (1, 1, 4W*Cout)   f32   per-step sum of h   (for BN2 batch stats)
    hsq_ref:  (1, 1, 4W*Cout)   f32   per-step sum of h^2
    """
    acc = jnp.dot(q_ref[...], w_ref[...], preferred_element_type=jnp.float32)
    acc = acc + b_ref[...]
    h_ref[...] = acc.astype(jnp.bfloat16)
    hsum_ref[0] = jnp.sum(acc, axis=0, keepdims=True)
    hsq_ref[0] = jnp.sum(acc * acc, axis=0, keepdims=True)


def _deconv2_skip_kernel(h_ref, q3_ref, s2_ref, t2_ref, w2m_ref, w2d_ref,
                         w2u_ref, ws_ref, b_ref, o_ref, pad_ref, *,
                         img_rows, imgs_per_block):
    """BN2+ReLU + deconv2 (k=3,s=1,p=1) + recomputed deconv_skip + biases.

    h_ref:   (rows, 2*WO) bf16   rows = imgs_per_block*img_rows, lanes = [p0|p1]
    q3_ref:  (rows, KP)   bf16   tap-fused BN3+ReLU input rows (skip branch)
    s2/t2:   (1, 2*WO)    f32    BN2 scale / shift (batch stats, host-computed)
    w2m:     (2*WO, 2*WO) bf16   deconv2 taps from h-row m   (both parities)
    w2d:     (WO, WO)     bf16   deconv2 tap from h-row m-1  (p1-in -> p0-out)
    w2u:     (WO, WO)     bf16   deconv2 tap from h-row m+1  (p0-in -> p1-out)
    ws:      (KP, 2*WO)   bf16   folded deconv_skip weights
    b_ref:   (1, 2*WO)    f32    lane-tiled (b2 + b_skip)
    o_ref:   (rows, 2*WO) f32    deconv2 + skip output (parity in lanes)
    pad_ref: (rows+2, 2*WO) f32  scratch for the 1-row vertical halo
    """
    rows, w2c2 = h_ref.shape
    wo = w2c2 // 2

    # BN2 (training-mode batch statistics) + ReLU in f32 on the VPU.
    a2 = jnp.maximum(h_ref[...].astype(jnp.float32) * s2_ref[...] + t2_ref[...],
                     0.0)

    # Vertical 1-row halo: pad_ref[r+1] = a2[r]; dn[r] = a2[r-1], up[r] = a2[r+1]
    # with zeros outside each image (the two shifted slices are the only
    # unaligned accesses left in the kernel).
    zrow = jnp.zeros((1, w2c2), jnp.float32)
    pad_ref[0:1, :] = zrow
    pad_ref[rows + 1:rows + 2, :] = zrow
    pad_ref[1:rows + 1, :] = a2
    dn = pad_ref[0:rows, :]
    up = pad_ref[2:rows + 2, :]
    if imgs_per_block > 1:
        # Zero the halo rows at interior image boundaries as well.
        r = jax.lax.broadcasted_iota(jnp.int32, (rows, 1), 0)
        dn = jnp.where(r % img_rows == 0, 0.0, dn)
        up = jnp.where(r % img_rows == img_rows - 1, 0.0, up)

    # deconv_skip recomputed from the tiny Q3 (cheaper than an h-sized HBM
    # round trip) + deconv2 contribution of h-row m + both biases.
    acc = jnp.dot(q3_ref[...], ws_ref[...], preferred_element_type=jnp.float32)
    acc = acc + jnp.dot(a2.astype(jnp.bfloat16), w2m_ref[...],
                        preferred_element_type=jnp.float32)
    acc = acc + b_ref[...]

    # Halo contributions: h-rows m-1 / m+1 feed exactly one output parity each.
    o_ref[:, 0:wo] = acc[:, 0:wo] + jnp.dot(
        dn[:, wo:w2c2].astype(jnp.bfloat16), w2d_ref[...],
        preferred_element_type=jnp.float32)
    o_ref[:, wo:w2c2] = acc[:, wo:w2c2] + jnp.dot(
        up[:, 0:wo].astype(jnp.bfloat16), w2u_ref[...],
        preferred_element_type=jnp.float32)


# ----------------------------------------------------------------------------
# pallas_call wrappers
# ----------------------------------------------------------------------------
def _pick_rows_per_step(n_img, img_rows, target_rows=256):
    """Images per grid step: fill the MXU M dimension (256 on v6e/v7x) while
    keeping an even number of parallel grid steps when possible (v7x has two
    TensorCores and the pipeline needs depth)."""
    best_rows = img_rows
    best_multi = None
    for bt in range(1, n_img + 1):
        if n_img % bt:
            continue
        rows = bt * img_rows
        if rows > target_rows and bt > 1:
            continue
        steps = n_img // bt
        best_rows = max(best_rows, rows)
        if steps >= 2 and steps % 2 == 0:
            best_multi = rows if best_multi is None else max(best_multi, rows)
    return best_multi if best_multi is not None else best_rows


def _deconv1_call(q1, w1f, b1t, *, rows_per_step):
    rows_total, kp = q1.shape
    w2c2 = w1f.shape[1]
    n_steps = rows_total // rows_per_step
    return pl.pallas_call(
        _deconv1_kernel,
        out_shape=(jax.ShapeDtypeStruct((rows_total, w2c2), jnp.bfloat16),
                   jax.ShapeDtypeStruct((n_steps, 1, w2c2), jnp.float32),
                   jax.ShapeDtypeStruct((n_steps, 1, w2c2), jnp.float32)),
        grid=(n_steps,),
        in_specs=[pl.BlockSpec((rows_per_step, kp), lambda i: (i, 0)),
                  pl.BlockSpec(w1f.shape, lambda i: (0, 0)),
                  pl.BlockSpec(b1t.shape, lambda i: (0, 0))],
        out_specs=(pl.BlockSpec((rows_per_step, w2c2), lambda i: (i, 0)),
                   pl.BlockSpec((1, 1, w2c2), lambda i: (i, 0, 0)),
                   pl.BlockSpec((1, 1, w2c2), lambda i: (i, 0, 0))),
        compiler_params=pltpu.CompilerParams(
            dimension_semantics=("parallel",),
            vmem_limit_bytes=_VMEM_LIMIT),
    )(q1, w1f, b1t)


def _deconv2_skip_call(h2d, q3, s2t, t2t, w2m, w2d, w2u, wsf, bot, *,
                       rows_per_step, img_rows):
    rows_total, w2c2 = h2d.shape
    kp = q3.shape[1]
    n_steps = rows_total // rows_per_step
    kernel = functools.partial(_deconv2_skip_kernel, img_rows=img_rows,
                               imgs_per_block=rows_per_step // img_rows)

    def full(a):
        return pl.BlockSpec(a.shape, lambda i: (0, 0))

    return pl.pallas_call(
        kernel,
        out_shape=jax.ShapeDtypeStruct((rows_total, w2c2), jnp.float32),
        grid=(n_steps,),
        in_specs=[pl.BlockSpec((rows_per_step, w2c2), lambda i: (i, 0)),
                  pl.BlockSpec((rows_per_step, kp), lambda i: (i, 0)),
                  full(s2t), full(t2t), full(w2m), full(w2d), full(w2u),
                  full(wsf), full(bot)],
        out_specs=pl.BlockSpec((rows_per_step, w2c2), lambda i: (i, 0)),
        scratch_shapes=[pltpu.VMEM((rows_per_step + 2, w2c2), jnp.float32)],
        compiler_params=pltpu.CompilerParams(
            dimension_semantics=("parallel",),
            vmem_limit_bytes=_VMEM_LIMIT),
    )(h2d, q3, s2t, t2t, w2m, w2d, w2u, wsf, bot)


# ----------------------------------------------------------------------------
# Host-side weight folding (done once at parameter setup).  The horizontal
# taps, the vertical taps and the output row parity are all encoded as a
# block-banded matrix so the kernels do single lane-dense bf16 matmuls.
# Zeros in the band are wasted MXU flops (~W/2x at large W) but the kernels
# are memory/layout-bound at these channel counts (see band-tiling TODO above).
# ----------------------------------------------------------------------------
def fold_deconv_k4s2_fused(w_pt, W, k_pad):
    """(Cin, Cout, 4, 4) -> (k_pad, 2*2W*Cout) bf16, row-tap & parity fused.

    LHS row m (per image) is Q[m] = [pad[m] | pad[m+1] | pad[m+2]] with
    pad[r] = relu(bn(x))[r-1]; output lanes are [out row 2m | out row 2m+1].
    Vertical taps: band 0 -> ky=3 (parity 0); band 1 -> ky=1 (p0) and ky=2 (p1);
    band 2 -> ky=0 (p1).  Horizontal taps: kx = xo - 2*ix + 1.
    """
    w = np.asarray(w_pt, np.float32)
    Cin, Cout = w.shape[0], w.shape[1]
    W2 = 2 * W
    wc = W * Cin
    wo = W2 * Cout
    M = np.zeros((k_pad, 2 * wo), np.float32)
    taps = {(0, 0): 3, (1, 0): 1, (1, 1): 2, (2, 1): 0}   # (band, parity) -> ky
    for (t, p), ky in taps.items():
        for ix in range(W):
            for xo in range(W2):
                kx = xo - 2 * ix + 1
                if 0 <= kx < 4:
                    M[t * wc + ix * Cin:t * wc + (ix + 1) * Cin,
                      p * wo + xo * Cout:p * wo + (xo + 1) * Cout] = w[:, :, ky, kx]
    return jnp.asarray(M, jnp.bfloat16)


def fold_conv_k3s1_parity(w_pt, W2):
    """(C, Cout, 3, 3) -> (w2m, w2d, w2u) bf16 for the parity-in-lanes layout.

    w2m (2WO, 2WO): h-row m -> output rows 2m (p0 lanes) and 2m+1 (p1 lanes);
    w2d (WO, WO):   h-row m-1, p1 half -> output row 2m   (ky=2);
    w2u (WO, WO):   h-row m+1, p0 half -> output row 2m+1 (ky=0).
    Horizontal taps: kx = xo - ix + 1.
    """
    w = np.asarray(w_pt, np.float32)
    C, Cout = w.shape[0], w.shape[1]
    wo = W2 * Cout

    def hblock(ky):
        B = np.zeros((wo, wo), np.float32)
        for ix in range(W2):
            for xo in range(W2):
                kx = xo - ix + 1
                if 0 <= kx < 3:
                    B[ix * C:(ix + 1) * C, xo * Cout:(xo + 1) * Cout] = w[:, :, ky, kx]
        return B

    k0, k1, k2 = hblock(0), hblock(1), hblock(2)
    w2m = np.zeros((2 * wo, 2 * wo), np.float32)
    w2m[:wo, :wo] = k1      # u[2m]   -> out[2m]
    w2m[:wo, wo:] = k2      # u[2m]   -> out[2m+1]
    w2m[wo:, :wo] = k0      # u[2m+1] -> out[2m]
    w2m[wo:, wo:] = k1      # u[2m+1] -> out[2m+1]
    return (jnp.asarray(w2m, jnp.bfloat16),
            jnp.asarray(k2, jnp.bfloat16),
            jnp.asarray(k0, jnp.bfloat16))


def _build_q(a_nhwc, k_pad):
    """relu(bn(x)) NHWC -> tap-fused, K-padded, bf16 MXU LHS (N*H, k_pad)."""
    N, H, W, C = a_nhwc.shape
    wc = W * C
    a2d = a_nhwc.reshape(N, H, wc)
    p = jnp.pad(a2d, ((0, 0), (1, 1), (0, 0)))
    q = jnp.concatenate([p[:, 0:H], p[:, 1:H + 1], p[:, 2:H + 2]], axis=-1)
    q = q.reshape(N * H, 3 * wc)
    if k_pad > 3 * wc:
        q = jnp.pad(q, ((0, 0), (0, k_pad - 3 * wc)))
    return q.astype(jnp.bfloat16)


# ----------------------------------------------------------------------------
# Plain-JAX glue: spectral norm, parameter setup, forward
# ----------------------------------------------------------------------------
def spectral_normalize(w_pt, n_iter=50, eps=1e-12):
    # torch.nn.utils.spectral_norm on ConvTranspose2d uses dim=1 (out_channels):
    # power-iterate on the (Cout, Cin*KH*KW) matricization; run to convergence
    # here (PyTorch does one iteration per forward with a persistent u).
    mat = jnp.transpose(w_pt, (1, 0, 2, 3)).reshape(w_pt.shape[1], -1)
    u = jnp.full((mat.shape[0],), 1.0 / np.sqrt(mat.shape[0]), mat.dtype)
    v = mat.T @ u
    v = v / (jnp.linalg.norm(v) + eps)
    for _ in range(n_iter):
        u = mat @ v
        u = u / (jnp.linalg.norm(u) + eps)
        v = mat.T @ u
        v = v / (jnp.linalg.norm(v) + eps)
    sigma = u @ (mat @ v)
    return w_pt / sigma


def init_params(key, cin, cout):
    ks = jax.random.split(key, 6)
    w1 = spectral_normalize(0.2 * jax.random.normal(ks[0], (cin, cout, 4, 4), jnp.float32))
    b1 = 0.1 * jax.random.normal(ks[1], (cout,), jnp.float32)
    w2 = spectral_normalize(0.2 * jax.random.normal(ks[2], (cout, cout, 3, 3), jnp.float32))
    b2 = 0.1 * jax.random.normal(ks[3], (cout,), jnp.float32)
    ws = spectral_normalize(0.2 * jax.random.normal(ks[4], (cin, cout, 4, 4), jnp.float32))
    bs = 0.1 * jax.random.normal(ks[5], (cout,), jnp.float32)
    return dict(
        bn1_gamma=jnp.ones((cin,), jnp.float32), bn1_beta=jnp.zeros((cin,), jnp.float32),
        bn2_gamma=jnp.ones((cout,), jnp.float32), bn2_beta=jnp.zeros((cout,), jnp.float32),
        bn3_gamma=jnp.ones((cin,), jnp.float32), bn3_beta=jnp.zeros((cin,), jnp.float32),
        w1_pt=w1, b1=b1, w2_pt=w2, b2=b2, ws_pt=ws, bs=bs,
    )


def prepare_params(raw, W):
    """One-time kernel-ready parameter prep (weight folding, bf16, lane tiling)."""
    Cin, Cout = int(raw['w1_pt'].shape[0]), int(raw['w1_pt'].shape[1])
    W2 = 2 * W
    wc = W * Cin
    kp = -(-3 * wc // 128) * 128            # pad K to a multiple of 128 lanes
    w2m, w2d, w2u = fold_conv_k3s1_parity(raw['w2_pt'], W2)
    return dict(
        cout=Cout, k_pad=kp,
        bn1_gamma=raw['bn1_gamma'], bn1_beta=raw['bn1_beta'],
        bn2_gamma=raw['bn2_gamma'], bn2_beta=raw['bn2_beta'],
        bn3_gamma=raw['bn3_gamma'], bn3_beta=raw['bn3_beta'],
        w1f=fold_deconv_k4s2_fused(raw['w1_pt'], W, kp),
        wsf=fold_deconv_k4s2_fused(raw['ws_pt'], W, kp),
        w2m=w2m, w2d=w2d, w2u=w2u,
        b1t=jnp.tile(raw['b1'], 2 * W2).reshape(1, -1).astype(jnp.float32),
        bot=jnp.tile(raw['b2'] + raw['bs'], 2 * W2).reshape(1, -1).astype(jnp.float32),
    )


def resblock_up_forward(x_nchw, prep):
    N, Cin, H, W = x_nchw.shape
    Cout = prep['cout']
    W2 = 2 * W
    eps = 1e-3

    # BN1/BN3 batch statistics + ReLU + vertical-tap fusion ("Q" build) on the
    # tiny input: one fused XLA elementwise pass, ~Cin/(8*Cout) of one output
    # tensor in HBM traffic, and it makes every kernel dot lane-dense & aligned.
    x = jnp.transpose(x_nchw, (0, 2, 3, 1)).astype(jnp.float32)       # NHWC
    mean_x = jnp.mean(x, axis=(0, 1, 2))
    var_x = jnp.var(x, axis=(0, 1, 2))
    inv_x = 1.0 / jnp.sqrt(var_x + eps)

    def bn_relu(gamma, beta):
        scale = gamma * inv_x
        return jnp.maximum(x * scale + (beta - mean_x * scale), 0.0)

    q1 = _build_q(bn_relu(prep['bn1_gamma'], prep['bn1_beta']), prep['k_pad'])
    q3 = _build_q(bn_relu(prep['bn3_gamma'], prep['bn3_beta']), prep['k_pad'])

    rows_per_step = _pick_rows_per_step(N, H)

    # Kernel 1: h = deconv1(relu(bn1(x)))  + per-step sums for BN2 stats.
    h2d, hsum, hsq = _deconv1_call(q1, prep['w1f'], prep['b1t'],
                                   rows_per_step=rows_per_step)

    # BN2 training-mode batch statistics from the kernel's per-step partials.
    # TODO(synk): E[h^2]-E[h]^2 in f32 cancels for very large N*H*W; switch to
    # a centered (Welford-style) reduction at that scale.
    count = N * (2 * H) * W2
    tot = hsum.reshape(-1, Cout).sum(axis=0)
    tot2 = hsq.reshape(-1, Cout).sum(axis=0)
    mean_h = tot / count
    var_h = tot2 / count - mean_h * mean_h
    scale2 = prep['bn2_gamma'] / jnp.sqrt(var_h + eps)
    shift2 = prep['bn2_beta'] - mean_h * scale2
    s2t = jnp.tile(scale2, 2 * W2).reshape(1, -1)
    t2t = jnp.tile(shift2, 2 * W2).reshape(1, -1)

    # Kernel 2: deconv2(relu(bn2(h))) + deconv_skip(relu(bn3(x))) + biases.
    out2d = _deconv2_skip_call(h2d, q3, s2t, t2t, prep['w2m'], prep['w2d'],
                               prep['w2u'], prep['wsf'], prep['bot'],
                               rows_per_step=rows_per_step, img_rows=H)

    # (N*H, [p0|p1] x 2W x Cout) -> NCHW (N, Cout, 2H, 2W): single boundary
    # transpose (replaces the NHWC->NCHW transpose that is needed anyway).
    out = out2d.reshape(N, H, 2, W2, Cout).transpose(0, 4, 1, 2, 3)
    return out.reshape(N, Cout, 2 * H, W2)


# ----------------------------------------------------------------------------
# Independent NumPy reference (direct ConvTranspose2d definition) for checking
# ----------------------------------------------------------------------------
def _np_bn_relu(x, gamma, beta, eps=1e-3):
    mean = x.mean(axis=(0, 2, 3), keepdims=True)
    var = x.var(axis=(0, 2, 3), keepdims=True)
    y = gamma.reshape(1, -1, 1, 1) * (x - mean) / np.sqrt(var + eps) \
        + beta.reshape(1, -1, 1, 1)
    return np.maximum(y, 0.0)


def _np_deconv(x, w, b, stride, pad):
    N, Cin, H, W = x.shape
    _, Cout, K, _ = w.shape
    Ho = (H - 1) * stride - 2 * pad + K
    Wo = (W - 1) * stride - 2 * pad + K
    y = np.zeros((N, Cout, Ho, Wo), np.float64)
    for iy in range(H):
        for ix in range(W):
            for ky in range(K):
                for kx in range(K):
                    oy = iy * stride - pad + ky
                    ox = ix * stride - pad + kx
                    if 0 <= oy < Ho and 0 <= ox < Wo:
                        y[:, :, oy, ox] += x[:, :, iy, ix] @ w[:, :, ky, kx]
    return y + b.reshape(1, -1, 1, 1)


def reference_forward(x_nchw, p):
    x = np.asarray(x_nchw, np.float64)
    g = lambda k: np.asarray(p[k], np.float64)
    h = _np_deconv(_np_bn_relu(x, g('bn1_gamma'), g('bn1_beta')), g('w1_pt'), g('b1'), 2, 1)
    h = _np_deconv(_np_bn_relu(h, g('bn2_gamma'), g('bn2_beta')), g('w2_pt'), g('b2'), 1, 1)
    s = _np_deconv(_np_bn_relu(x, g('bn3_gamma'), g('bn3_beta')), g('ws_pt'), g('bs'), 2, 1)
    return h + s


if __name__ == "__main__":
    key = jax.random.PRNGKey(0)
    kx, kp = jax.random.split(key)
    N, CIN, COUT, H, W = 2, 4, 8, 16, 16
    x = jax.random.normal(kx, (N, CIN, H, W), jnp.float32)     # NCHW, like PyTorch
    params = init_params(kp, CIN, COUT)
    prep = prepare_params(params, W)

    y = resblock_up_forward(x, prep)
    y = jax.block_until_ready(y)
    assert y.shape == (N, COUT, 2 * H, 2 * W), y.shape

    # bf16 MXU operands and a bf16 h intermediate (f32 accumulation) shift
    # results at the ~1e-3..1e-2 level vs. the exact float64 reference.
    ref = reference_forward(np.asarray(x), params)
    np.testing.assert_allclose(np.asarray(y), ref, rtol=3e-2, atol=3e-2)
    print("KERNEL_OK")
</pallas_src>

<mosaic_0001>
module attributes {stable_mosaic.version = 11 : i64} {
  func.func @_deconv1_kernel(%arg0: i32, %arg1: memref<16x256xbf16, #tpu.memory_space<vmem>>, %arg2: memref<256x512xbf16, #tpu.memory_space<vmem>>, %arg3: memref<1x512xf32, #tpu.memory_space<vmem>>, %arg4: memref<16x512xbf16, #tpu.memory_space<vmem>>, %arg5: memref<1x1x512xf32, #tpu.memory_space<vmem>>, %arg6: memref<1x1x512xf32, #tpu.memory_space<vmem>>) attributes {dimension_semantics = [#tpu.dimension_semantics<parallel>], iteration_bounds = array<i64: 2>, scalar_prefetch = 0 : i64, scratch_operands = 0 : i64, tpu.core_type = #tpu.core_type<tc>, window_params = [{transform_indices = @transform_0, window_bounds = array<i64: 16, 256>}, {pipeline_mode = #tpu.pipeline_mode<synchronous>, transform_indices = @transform_1, window_bounds = array<i64: 256, 512>}, {pipeline_mode = #tpu.pipeline_mode<synchronous>, transform_indices = @transform_2, window_bounds = array<i64: 1, 512>}, {transform_indices = @transform_3, window_bounds = array<i64: 16, 512>}, {transform_indices = @transform_4, window_bounds = array<i64: 1, 1, 512>}, {transform_indices = @transform_5, window_bounds = array<i64: 1, 1, 512>}]} {
    %c0 = arith.constant 0 : index
    %c0_0 = arith.constant 0 : index
    %0 = vector.load %arg1[%c0, %c0_0] : memref<16x256xbf16, #tpu.memory_space<vmem>>, vector<16x256xbf16>
    %c0_1 = arith.constant 0 : index
    %c0_2 = arith.constant 0 : index
    %1 = vector.load %arg2[%c0_1, %c0_2] : memref<256x512xbf16, #tpu.memory_space<vmem>>, vector<256x512xbf16>
    %cst = arith.constant dense<0.000000e+00> : vector<16x512xf32>
    %2 = tpu.matmul %0, %1, %cst {dimension_numbers = #tpu.dot_dimension_numbers<[1], [0], [0], [1], [0, 0, 1, 1], [], []>} : vector<16x256xbf16>, vector<256x512xbf16>, vector<16x512xf32> -> vector<16x512xf32>
    %c0_3 = arith.constant 0 : index
    %c0_4 = arith.constant 0 : index
    %3 = vector.load %arg3[%c0_3, %c0_4] : memref<1x512xf32, #tpu.memory_space<vmem>>, vector<1x512xf32>
    %4 = vector.broadcast %3 : vector<1x512xf32> to vector<16x512xf32>
    %5 = arith.addf %2, %4 : vector<16x512xf32>
    %6 = arith.truncf %5 : vector<16x512xf32> to vector<16x512xbf16>
    %c0_5 = arith.constant 0 : index
    %c0_6 = arith.constant 0 : index
    %7 = vector.load %arg4[%c0_5, %c0_6] : memref<16x512xbf16, #tpu.memory_space<vmem>>, vector<16x512xbf16>
    tpu.vector_store %arg4[%c0_5, %c0_6], %6 {strides = array<i32>} : memref<16x512xbf16, #tpu.memory_space<vmem>>, vector<16x512xbf16>,
    %cst_7 = arith.constant dense<0.000000e+00> : vector<512xf32>
    %8 = vector.multi_reduction <add>, %5, %cst_7 [0] : vector<16x512xf32> to vector<512xf32>
    %9 = vector.shape_cast %8 : vector<512xf32> to vector<1x512xf32>
    %c0_8 = arith.constant 0 : index
    %c0_9 = arith.constant 0 : index
    %c0_10 = arith.constant 0 : index
    %10 = vector.load %arg5[%c0_8, %c0_9, %c0_10] : memref<1x1x512xf32, #tpu.memory_space<vmem>>, vector<1x1x512xf32>
    %11 = vector.shape_cast %10 : vector<1x1x512xf32> to vector<1x512xf32>
    %12 = vector.shape_cast %9 : vector<1x512xf32> to vector<1x1x512xf32>
    tpu.vector_store %arg5[%c0_8, %c0_9, %c0_10], %12 {strides = array<i32>} : memref<1x1x512xf32, #tpu.memory_space<vmem>>, vector<1x1x512xf32>,
    %13 = arith.mulf %5, %5 : vector<16x512xf32>
    %cst_11 = arith.constant dense<0.000000e+00> : vector<512xf32>
    %14 = vector.multi_reduction <add>, %13, %cst_11 [0] : vector<16x512xf32> to vector<512xf32>
    %15 = vector.shape_cast %14 : vector<512xf32> to vector<1x512xf32>
    %c0_12 = arith.constant 0 : index
    %c0_13 = arith.constant 0 : index
    %c0_14 = arith.constant 0 : index
    %16 = vector.load %arg6[%c0_12, %c0_13, %c0_14] : memref<1x1x512xf32, #tpu.memory_space<vmem>>, vector<1x1x512xf32>
    %17 = vector.shape_cast %16 : vector<1x1x512xf32> to vector<1x512xf32>
    %18 = vector.shape_cast %15 : vector<1x512xf32> to vector<1x1x512xf32>
    tpu.vector_store %arg6[%c0_12, %c0_13, %c0_14], %18 {strides = array<i32>} : memref<1x1x512xf32, #tpu.memory_space<vmem>>, vector<1x1x512xf32>,
    return
  }
  func.func @transform_0(%arg0: i32) -> (i32, i32) {
    %c0_i32 = arith.constant 0 : i32
    %c0_i32_0 = arith.constant 0 : i32
    return %arg0, %c0_i32 : i32, i32
  }
  func.func @transform_1(%arg0: i32) -> (i32, i32) {
    %c0_i32 = arith.constant 0 : i32
    %c0_i32_0 = arith.constant 0 : i32
    %c0_i32_1 = arith.constant 0 : i32
    return %c0_i32, %c0_i32_0 : i32, i32
  }
  func.func @transform_2(%arg0: i32) -> (i32, i32) {
    %c0_i32 = arith.constant 0 : i32
    %c0_i32_0 = arith.constant 0 : i32
    %c0_i32_1 = arith.constant 0 : i32
    return %c0_i32, %c0_i32_0 : i32, i32
  }
  func.func @transform_3(%arg0: i32) -> (i32, i32) {
    %c0_i32 = arith.constant 0 : i32
    %c0_i32_0 = arith.constant 0 : i32
    return %arg0, %c0_i32 : i32, i32
  }
  func.func @transform_4(%arg0: i32) -> (i32, i32, i32) {
    %c0_i32 = arith.constant 0 : i32
    %c0_i32_0 = arith.constant 0 : i32
    %c0_i32_1 = arith.constant 0 : i32
    return %arg0, %c0_i32, %c0_i32_0 : i32, i32, i32
  }
  func.func @transform_5(%arg0: i32) -> (i32, i32, i32) {
    %c0_i32 = arith.constant 0 : i32
    %c0_i32_0 = arith.constant 0 : i32
    %c0_i32_1 = arith.constant 0 : i32
    return %arg0, %c0_i32, %c0_i32_0 : i32, i32, i32
  }
}

</mosaic_0001>

<llo_original>
// kernel: tpu_custom_call.1
$region0: #{tpu_custom_call.1}
  #allocation0 [shape = 'u32[]', space=smem, size = 0x4, offset = 0x4, fixed_abs, tag = 'smem constant byte address 0x4 - core index']
  #allocation1 [shape = 'u32[144,128]{1,0:T(1,128)}', space=vmem, size = 0x12000, scoped, tag = 'internal scratch']
  %s0 = inlined_call_operand.hbm [shape: bf16[32,256], index: 0, kind: input, shape index: {}]
  %s1 = inlined_call_operand.hbm [shape: bf16[256,512], index: 1, kind: input, shape index: {}]
  %s2 = inlined_call_operand.hbm [shape: f32[1,512], index: 2, kind: input, shape index: {}]
  %s3 = inlined_call_operand.hbm [shape: bf16[32,512], index: 3, kind: output, shape index: {0}]
  %s4 = inlined_call_operand.hbm [shape: f32[2,1,512], index: 4, kind: output, shape index: {1}]
  %s5 = inlined_call_operand.hbm [shape: f32[2,1,512], index: 5, kind: output, shape index: {2}]
  %6 = xla_tuple %s3, %s4, %s5
  %s7 = sld [smem:[#allocation0]]
  $region73: #{tpu_custom_call.1} parent=0
    _
  %s9 = ssub.s32 1, %s7
  %s10 = scalar_select 0, %s9, %s7
  $region1: #{tpu_custom_call.1} parent=0
    #allocation2 [shape = 'u8[16384]{0}', space=vmem, size = 0x4000, scoped, tag = 'input window, operand 0']
    #allocation3 [shape = 's32[2]{0}', space=sflag, size = 0x8, scoped, tag = 'scoped memory for tpu_custom_call.1']
    #allocation4 [shape = 's32[2]{0}', space=sflag, size = 0x8, scoped, tag = 'scoped memory for tpu_custom_call.1']
    #allocation5 [shape = 'u8[262144]{0}', space=vmem, size = 0x40000, scoped, tag = 'input window, operand 1, single buffered']
    #allocation6 [shape = 's32[1]{0}', space=sflag, size = 0x4, scoped, tag = 'scoped memory for tpu_custom_call.1']
    #allocation7 [shape = 'u8[2048]{0}', space=vmem, size = 0x800, scoped, tag = 'input window, operand 2, single buffered']
    #allocation8 [shape = 'u8[32768]{0}', space=vmem, size = 0x8000, scoped, tag = 'output window, operand 0']
    #allocation9 [shape = 'u8[4096]{0}', space=vmem, size = 0x1000, scoped, tag = 'output window, operand 1']
    #allocation10 [shape = 's32[2]{0}', space=sflag, size = 0x8, scoped, tag = 'scoped memory for tpu_custom_call.1']
    #allocation11 [shape = 'u8[4096]{0}', space=vmem, size = 0x1000, scoped, tag = 'output window, operand 2']
    %11 = vsyncpa [#allocation3], 0
    %s12 = scalar_lea.sflag [#allocation3], 1
    %13 = vsyncpa %s12, 0
    %14 = vsyncpa [#allocation6], 0
    %15 = vsyncpa [#allocation4], 0
    %s16 = scalar_lea.sflag [#allocation4], 1
    %17 = vsyncpa %s16, 0
    %18 = vsyncpa [#allocation10], 0
    %s19 = scalar_lea.sflag [#allocation10], 1
    %20 = vsyncpa %s19, 0
    loop: start=0, step=1, limit=4
    $region2: #{tpu_custom_call.1} parent=1 // loop_pre_header
      _
    $region3: #{tpu_custom_call.1} parent=1 // loop_header
      %s22 = sphi 0, %s26
      %p23 = scmp.ge.s32.totalorder %s22, 4
      %s32 = sphi 0, %s34
      %s35 = sphi 0, %s32
      %s36 = sphi 0, %s35
      %s52 = sphi 0, %s36
      %s56 = sphi 0, %s56
      %s58 = sphi 0, %s56
      %s59 = sphi 0, %s58
      %s73 = sphi 0, %s59
      %s77 = sphi 0, %s77
      %s79 = sphi 0, %s77
      %s80 = sphi 0, %s79
      %s94 = sphi 0, %s80
      %s100 = sphi 0, %s102
      %s103 = sphi 0, %s100
      %s104 = sphi 0, %s103
      %s120 = sphi 0, %s104
      %s126 = sphi 0, %s128
      %s129 = sphi 0, %s126
      %s130 = sphi 0, %s129
      %s146 = sphi 0, %s130
      %s152 = sphi 0, %s154
      %s155 = sphi 0, %s152
      %s156 = sphi 0, %s155
      %s172 = sphi 0, %s156
    $region4: #{tpu_custom_call.1} parent=1 // loop_header_branch
      %25 = sbr.rel (%p23) target = $region8
    $region5: #{tpu_custom_call.1} parent=1 // loop_body
      %s27 = ssub.s32 %s22, 1
      %s28 = ssub.s32 %s22, 2
      %s29 = sadd.s32 %s22, 1
      %s30 = ssub.s32 %s22, %s29
      %p31 = scmp.eq.s32.totalorder %s30, 0
      %s33 = sadd.s32 %s32, 1
      %s34 = scalar_select %p31, %s32, %s33
      %p37 = pneg %p31
      %p38 = scmp.eq.s32.totalorder %s22, 1
      %p39 = por %p37, %p38
      %p40 = scmp.ne.s32.totalorder %s32, %s35
      %p41 = scmp.eq.s32.totalorder %s22, 0
      %p42 = por %p40, %p41
      %p43 = scmp.ne.s32.totalorder %s32, %s35
      %p44 = scmp.eq.s32.totalorder %s27, 1
      %p45 = por %p43, %p44
      %p46 = scmp.ne.s32.totalorder %s35, %s36
      %p47 = scmp.eq.s32.totalorder %s27, 0
      %p48 = por %p46, %p47
      %p49 = scmp.ne.s32.totalorder %s35, %s36
      %p50 = scmp.eq.s32.totalorder %s28, 1
      %p51 = por %p49, %p50
      %p53 = scmp.ne.s32.totalorder %s36, %s52
      %p54 = scmp.eq.s32.totalorder %s28, 0
      %p55 = por %p53, %p54
      %s57 = sadd.s32 %s56, 1
      %p60 = scmp.eq.s32.totalorder %s22, 1
      %p61 = scmp.ne.s32.totalorder %s56, %s58
      %p62 = scmp.eq.s32.totalorder %s22, 0
      %p63 = por %p61, %p62
      %p64 = scmp.ne.s32.totalorder %s56, %s58
      %p65 = scmp.eq.s32.totalorder %s27, 1
      %p66 = por %p64, %p65
      %p67 = scmp.ne.s32.totalorder %s58, %s59
      %p68 = scmp.eq.s32.totalorder %s27, 0
      %p69 = por %p67, %p68
      %p70 = scmp.ne.s32.totalorder %s58, %s59
      %p71 = scmp.eq.s32.totalorder %s28, 1
      %p72 = por %p70, %p71
      %p74 = scmp.ne.s32.totalorder %s59, %s73
      %p75 = scmp.eq.s32.totalorder %s28, 0
      %p76 = por %p74, %p75
      %s78 = sadd.s32 %s77, 1
      %p81 = scmp.eq.s32.totalorder %s22, 1
      %p82 = scmp.ne.s32.totalorder %s77, %s79
      %p83 = scmp.eq.s32.totalorder %s22, 0
      %p84 = por %p82, %p83
      %p85 = scmp.ne.s32.totalorder %s77, %s79
      %p86 = scmp.eq.s32.totalorder %s27, 1
      %p87 = por %p85, %p86
      %p88 = scmp.ne.s32.totalorder %s79, %s80
      %p89 = scmp.eq.s32.totalorder %s27, 0
      %p90 = por %p88, %p89
      %p91 = scmp.ne.s32.totalorder %s79, %s80
      %p92 = scmp.eq.s32.totalorder %s28, 1
      %p93 = por %p91, %p92
      %p95 = scmp.ne.s32.totalorder %s80, %s94
      %p96 = scmp.eq.s32.totalorder %s28, 0
      %p97 = por %p95, %p96
      %s98 = ssub.s32 %s22, %s29
      %p99 = scmp.eq.s32.totalorder %s98, 0
      %s101 = sadd.s32 %s100, 1
      %s102 = scalar_select %p99, %s100, %s101
      %p105 = pneg %p99
      %p106 = scmp.eq.s32.totalorder %s22, 1
      %p107 = por %p105, %p106
      %p108 = scmp.ne.s32.totalorder %s100, %s103
      %p109 = scmp.eq.s32.totalorder %s22, 0
      %p110 = por %p108, %p109
      %p111 = scmp.ne.s32.totalorder %s100, %s103
      %p112 = scmp.eq.s32.totalorder %s27, 1
      %p113 = por %p111, %p112
      %p114 = scmp.ne.s32.totalorder %s103, %s104
      %p115 = scmp.eq.s32.totalorder %s27, 0
      %p116 = por %p114, %p115
      %p117 = scmp.ne.s32.totalorder %s103, %s104
      %p118 = scmp.eq.s32.totalorder %s28, 1
      %p119 = por %p117, %p118
      %p121 = scmp.ne.s32.totalorder %s104, %s120
      %p122 = scmp.eq.s32.totalorder %s28, 0
      %p123 = por %p121, %p122
      %s124 = ssub.s32 %s22, %s29
      %p125 = scmp.eq.s32.totalorder %s124, 0
      %s127 = sadd.s32 %s126, 1
      %s128 = scalar_select %p125, %s126, %s127
      %p131 = pneg %p125
      %p132 = scmp.eq.s32.totalorder %s22, 1
      %p133 = por %p131, %p132
      %p134 = scmp.ne.s32.totalorder %s126, %s129
      %p135 = scmp.eq.s32.totalorder %s22, 0
      %p136 = por %p134, %p135
      %p137 = scmp.ne.s32.totalorder %s126, %s129
      %p138 = scmp.eq.s32.totalorder %s27, 1
      %p139 = por %p137, %p138
      %p140 = scmp.ne.s32.totalorder %s129, %s130
      %p141 = scmp.eq.s32.totalorder %s27, 0
      %p142 = por %p140, %p141
      %p143 = scmp.ne.s32.totalorder %s129, %s130
      %p144 = scmp.eq.s32.totalorder %s28, 1
      %p145 = por %p143, %p144
      %p147 = scmp.ne.s32.totalorder %s130, %s146
      %p148 = scmp.eq.s32.totalorder %s28, 0
      %p149 = por %p147, %p148
      %s150 = ssub.s32 %s22, %s29
      %p151 = scmp.eq.s32.totalorder %s150, 0
      %s153 = sadd.s32 %s152, 1
      %s154 = scalar_select %p151, %s152, %s153
      %p157 = pneg %p151
      %p158 = scmp.eq.s32.totalorder %s22, 1
      %p159 = por %p157, %p158
      %p160 = scmp.ne.s32.totalorder %s152, %s155
      %p161 = scmp.eq.s32.totalorder %s22, 0
      %p162 = por %p160, %p161
      %p163 = scmp.ne.s32.totalorder %s152, %s155
      %p164 = scmp.eq.s32.totalorder %s27, 1
      %p165 = por %p163, %p164
      %p166 = scmp.ne.s32.totalorder %s155, %s156
      %p167 = scmp.eq.s32.totalorder %s27, 0
      %p168 = por %p166, %p167
      %p169 = scmp.ne.s32.totalorder %s155, %s156
      %p170 = scmp.eq.s32.totalorder %s28, 1
      %p171 = por %p169, %p170
      %p173 = scmp.ne.s32.totalorder %s156, %s172
      %p174 = scmp.eq.s32.totalorder %s28, 0
      %p175 = por %p173, %p174
      %p176 = scmp.le.s32.totalorder 1, %s22
      %p177 = scmp.lt.s32.totalorder %s22, 3
      %p178 = pnand %p176, %p177
      %p179 = pneg %p178
      // Predicated region
      $region9: #{tpu_custom_call.1} parent=5 // pred_check
        _
      $region10: #{tpu_custom_call.1} parent=5 // pred_check_branch
        %181 = sbr.rel (%p178) target = $region12
      $region11: #{tpu_custom_call.1} parent=5 // pred_region
        %s182 = ssub.s32 %s22, 1
        // Predicated region
        $region13: #{tpu_custom_call.1} parent=11 // pred_check
          %p183 = pneg %p69
        $region14: #{tpu_custom_call.1} parent=11 // pred_check_branch
          %185 = sbr.rel (%p183) target = $region16
        $region15: #{tpu_custom_call.1} parent=11 // pred_region
          %s187 = ssub.s32 8192, 8192
          %188 = vsyncadd [#allocation6], %s187
          %s189 = sshll.u32 [#allocation5], 4
          %s190 = int_to_ptr.vmem [resolvable:$true] %s189
          %195 = dma.hbm_to_vmem [thread:$0]  %s1, 8192, %s190, [#allocation6], 256, 256, 16
        $region16: #{tpu_custom_call.1} parent=11 // pred_fallthru
          _
        // Predicated region
        $region17: #{tpu_custom_call.1} parent=11 // pred_check
          %p196 = pneg %p90
        $region18: #{tpu_custom_call.1} parent=11 // pred_check_branch
          %198 = sbr.rel (%p196) target = $region20
        $region19: #{tpu_custom_call.1} parent=11 // pred_region
          %s200 = ssub.s32 64, 64
          %201 = vsyncadd [#allocation6], %s200
          %s203 = sshll.u32 [#allocation7], 4
          %s204 = int_to_ptr.vmem [resolvable:$true] %s203
          %206 = dma.hbm_to_vmem [thread:$0]  %s2, 64, %s204, [#allocation6]
        $region20: #{tpu_custom_call.1} parent=11 // pred_fallthru
          _
      $region12: #{tpu_custom_call.1} parent=5 // pred_fallthru
        _
      %p207 = scmp.lt.s32.totalorder %s22, 2
      // Predicated region
      $region21: #{tpu_custom_call.1} parent=5 // pred_check
        %p208 = pneg %p207
      $region22: #{tpu_custom_call.1} parent=5 // pred_check_branch
        %210 = sbr.rel (%p208) target = $region24
      $region23: #{tpu_custom_call.1} parent=5 // pred_region
        // Predicated region
        $region25: #{tpu_custom_call.1} parent=23 // pred_check
          %p211 = pneg %p42
        $region26: #{tpu_custom_call.1} parent=23 // pred_check_branch
          %213 = sbr.rel (%p211) target = $region28
        $region27: #{tpu_custom_call.1} parent=23 // pred_region
          %s214 = sand.u32 %s32, 1
          %s215 = scalar_lea.sflag [#allocation3], %s214
          %s216 = sand.u32 %s32, 1
          %s217 = smul.addr %s216, 16
          %s218 = scalar_lea.vmem [#allocation2], %s217
          %s219 = smul.u32 2, %s22
          %s221 = ssub.s32 256, 256
          %222 = vsyncadd %s215, %s221
          %s223 = smul.addr %s219, 2
          %s224 = smul.addr %s223, 64
          %s225 = scalar_lea.hbm %s0, %s224
          %s226 = sshll.u32 %s218, 4
          %s227 = int_to_ptr.vmem [resolvable:$true] %s226
          %232 = dma.hbm_to_vmem [thread:$0]  %s225, 256, %s227, %s215, 128, 128, 8
        $region28: #{tpu_custom_call.1} parent=23 // pred_fallthru
          _
      $region24: #{tpu_custom_call.1} parent=5 // pred_fallthru
        _
      %p233 = scmp.le.s32.totalorder 1, %s22
      %p234 = scmp.lt.s32.totalorder %s22, 3
      %p235 = pnand %p233, %p234
      %p236 = pneg %p235
      // Predicated region
      $region29: #{tpu_custom_call.1} parent=5 // pred_check
        _
      $region30: #{tpu_custom_call.1} parent=5 // pred_check_branch
        %238 = sbr.rel (%p235) target = $region32
      $region31: #{tpu_custom_call.1} parent=5 // pred_region
        %s239 = ssub.s32 %s22, 1
        %s240 = sand.u32 %s35, 1
        %s241 = scalar_lea.sflag [#allocation3], %s240
        %s242 = sand.u32 %s35, 1
        %s243 = smul.addr %s242, 16
        %s244 = scalar_lea.vmem [#allocation2], %s243
        // Predicated region
        $region33: #{tpu_custom_call.1} parent=31 // pred_check
          %p245 = pneg %p48
        $region34: #{tpu_custom_call.1} parent=31 // pred_check_branch
          %247 = sbr.rel (%p245) target = $region36
        $region35: #{tpu_custom_call.1} parent=31 // pred_region
          %248 = dma.done %s241, 256
        $region36: #{tpu_custom_call.1} parent=31 // pred_fallthru
          _
        // Predicated region
        $region37: #{tpu_custom_call.1} parent=31 // pred_check
          %p249 = pneg %p69
        $region38: #{tpu_custom_call.1} parent=31 // pred_check_branch
          %251 = sbr.rel (%p249) target = $region40
        $region39: #{tpu_custom_call.1} parent=31 // pred_region
          %252 = dma.done [#allocation6], 8192
        $region40: #{tpu_custom_call.1} parent=31 // pred_fallthru
          _
        // Predicated region
        $region41: #{tpu_custom_call.1} parent=31 // pred_check
          %p253 = pneg %p90
        $region42: #{tpu_custom_call.1} parent=31 // pred_check_branch
          %255 = sbr.rel (%p253) target = $region44
        $region43: #{tpu_custom_call.1} parent=31 // pred_region
          %256 = dma.done [#allocation6], 64
        $region44: #{tpu_custom_call.1} parent=31 // pred_fallthru
          _
        %s257 = sand.u32 %s35, 1
        %s258 = scalar_lea.sflag [#allocation3], %s257
        %s259 = sand.u32 %s35, 1
        %s260 = smul.addr %s259, 16
        %s261 = scalar_lea.vmem [#allocation2], %s260
        %p262 = pneg %p48
        %p263 = pneg %p45
        %p264 = pneg %p69
        %p265 = pneg %p66
        %p266 = pneg %p90
        %p267 = pneg %p87
        %p268 = pneg %p116
        %p269 = pneg %p113
        %s270 = sand.u32 %s103, 1
        %s271 = scalar_lea.sflag [#allocation4], %s270
        %s272 = sand.u32 %s103, 1
        %s273 = smul.addr %s272, 32
        %s274 = scalar_lea.vmem [#allocation8], %s273
        %p275 = pneg %p142
        %p276 = pneg %p139
        %s277 = sand.u32 %s27, 1
        %s278 = scalar_lea.sflag [#allocation10], %s277
        %s279 = sand.u32 %s129, 1
        %s280 = smul.addr %s279, 4
        %s281 = scalar_lea.vmem [#allocation9], %s280
        %p282 = pneg %p168
        %p283 = pneg %p165
        %s284 = sand.u32 %s27, 1
        %s285 = scalar_lea.sflag [#allocation10], %s284
        %s286 = sand.u32 %s155, 1
        %s287 = smul.addr %s286, 4
        %s288 = scalar_lea.vmem [#allocation11], %s287
        %s289 = smul.u32 2, %s27
        %s290 = smul.u32 2, %s27
        %v291 = vld [vmem:[%s244] sm:$0xff]
        %v292 = vld [vmem:[%s244 + $0x8] sm:$0xff]
        %v293 = vld [vmem:[#allocation5] sm:$0xff]
        %v294 = vld [vmem:[#allocation5 + $0x8] sm:$0xff]
        %v295 = vld [vmem:[#allocation5 + $0x10] sm:$0xff]
        %v296 = vld [vmem:[#allocation5 + $0x18] sm:$0xff]
        %v297 = vld [vmem:[#allocation5 + $0x20] sm:$0xff]
        %v298 = vld [vmem:[#allocation5 + $0x28] sm:$0xff]
        %v299 = vld [vmem:[#allocation5 + $0x30] sm:$0xff]
        %v300 = vld [vmem:[#allocation5 + $0x38] sm:$0xff]
        %v301 = vld [vmem:[#allocation5 + $0x40] sm:$0xff]
        %v302 = vld [vmem:[#allocation5 + $0x48] sm:$0xff]
        %v303 = vld [vmem:[#allocation5 + $0x50] sm:$0xff]
        %v304 = vld [vmem:[#allocation5 + $0x58] sm:$0xff]
        %v305 = vld [vmem:[#allocation5 + $0x60] sm:$0xff]
        %v306 = vld [vmem:[#allocation5 + $0x68] sm:$0xff]
        %v307 = vld [vmem:[#allocation5 + $0x70] sm:$0xff]
        %v308 = vld [vmem:[#allocation5 + $0x78] sm:$0xff]
        %v309 = vld [vmem:[#allocation5 + $0x80] sm:$0xff]
        %v310 = vld [vmem:[#allocation5 + $0x88] sm:$0xff]
        %v311 = vld [vmem:[#allocation5 + $0x90] sm:$0xff]
        %v312 = vld [vmem:[#allocation5 + $0x98] sm:$0xff]
        %v313 = vld [vmem:[#allocation5 + $0xa0] sm:$0xff]
        %v314 = vld [vmem:[#allocation5 + $0xa8] sm:$0xff]
        %v315 = vld [vmem:[#allocation5 + $0xb0] sm:$0xff]
        %v316 = vld [vmem:[#allocation5 + $0xb8] sm:$0xff]
        %v317 = vld [vmem:[#allocation5 + $0xc0] sm:$0xff]
        %v318 = vld [vmem:[#allocation5 + $0xc8] sm:$0xff]
        %v319 = vld [vmem:[#allocation5 + $0xd0] sm:$0xff]
        %v320 = vld [vmem:[#allocation5 + $0xd8] sm:$0xff]
        %v321 = vld [vmem:[#allocation5 + $0xe0] sm:$0xff]
        %v322 = vld [vmem:[#allocation5 + $0xe8] sm:$0xff]
        %v323 = vld [vmem:[#allocation5 + $0xf0] sm:$0xff]
        %v324 = vld [vmem:[#allocation5 + $0xf8] sm:$0xff]
        %v325 = vld [vmem:[#allocation5 + $0x100] sm:$0xff]
        %v326 = vld [vmem:[#allocation5 + $0x108] sm:$0xff]
        %v327 = vld [vmem:[#allocation5 + $0x110] sm:$0xff]
        %v328 = vld [vmem:[#allocation5 + $0x118] sm:$0xff]
        %v329 = vld [vmem:[#allocation5 + $0x120] sm:$0xff]
        %v330 = vld [vmem:[#allocation5 + $0x128] sm:$0xff]
        %v331 = vld [vmem:[#allocation5 + $0x130] sm:$0xff]
        %v332 = vld [vmem:[#allocation5 + $0x138] sm:$0xff]
        %v333 = vld [vmem:[#allocation5 + $0x140] sm:$0xff]
        %v334 = vld [vmem:[#allocation5 + $0x148] sm:$0xff]
        %v335 = vld [vmem:[#allocation5 + $0x150] sm:$0xff]
        %v336 = vld [vmem:[#allocation5 + $0x158] sm:$0xff]
        %v337 = vld [vmem:[#allocation5 + $0x160] sm:$0xff]
        %v338 = vld [vmem:[#allocation5 + $0x168] sm:$0xff]
        %v339 = vld [vmem:[#allocation5 + $0x170] sm:$0xff]
        %v340 = vld [vmem:[#allocation5 + $0x178] sm:$0xff]
        %v341 = vld [vmem:[#allocation5 + $0x180] sm:$0xff]
        %v342 = vld [vmem:[#allocation5 + $0x188] sm:$0xff]
        %v343 = vld [vmem:[#allocation5 + $0x190] sm:$0xff]
        %v344 = vld [vmem:[#allocation5 + $0x198] sm:$0xff]
        %v345 = vld [vmem:[#allocation5 + $0x1a0] sm:$0xff]
        %v346 = vld [vmem:[#allocation5 + $0x1a8] sm:$0xff]
        %v347 = vld [vmem:[#allocation5 + $0x1b0] sm:$0xff]
        %v348 = vld [vmem:[#allocation5 + $0x1b8] sm:$0xff]
        %v349 = vld [vmem:[#allocation5 + $0x1c0] sm:$0xff]
        %v350 = vld [vmem:[#allocation5 + $0x1c8] sm:$0xff]
        %v351 = vld [vmem:[#allocation5 + $0x1d0] sm:$0xff]
        %v352 = vld [vmem:[#allocation5 + $0x1d8] sm:$0xff]
        %v353 = vld [vmem:[#allocation5 + $0x1e0] sm:$0xff]
        %v354 = vld [vmem:[#allocation5 + $0x1e8] sm:$0xff]
        %v355 = vld [vmem:[#allocation5 + $0x1f0] sm:$0xff]
        %v356 = vld [vmem:[#allocation5 + $0x1f8] sm:$0xff]
        %v357 = vld [vmem:[#allocation7] sm:$0xf]
        %v359 = vlaneseq
        %v360 = vshrl.u32 %v359, 7
        %v361 = vsub.s32 0, %v360
        %v362 = vrot.slane %v357, %v361
        %v363 = vlaneseq
        %v364 = vshrl.u32 %v363, 7
        %v365 = vsub.s32 1, %v364
        %v366 = vrot.slane %v357, %v365
        %v367 = vlaneseq
        %v368 = vshrl.u32 %v367, 7
        %v369 = vsub.s32 2, %v368
        %v370 = vrot.slane %v357, %v369
        %v371 = vlaneseq
        %v372 = vshrl.u32 %v371, 7
        %v373 = vsub.s32 3, %v372
        %v374 = vrot.slane %v357, %v373
        %v381 = vunpack.c.l.b16 %v291
        %v382 = vunpack.c.h.b16 %v291
        %v383 = vunpack.c.l.b16 %v292
        %v384 = vunpack.c.h.b16 %v292
        %v385 = vpack.c.b16 %v383, %v381
        %v386 = vpack.c.b16 %v384, %v382
        %v453 = vunpack.c.l.b16 %v293
        %v454 = vunpack.c.h.b16 %v293
        %v455 = vunpack.c.l.b16 %v294
        %v456 = vunpack.c.h.b16 %v294
        %v457 = vunpack.c.l.b16 %v295
        %v458 = vunpack.c.h.b16 %v295
        %v459 = vunpack.c.l.b16 %v296
        %v460 = vunpack.c.h.b16 %v296
        %v461 = vunpack.c.l.b16 %v297
        %v462 = vunpack.c.h.b16 %v297
        %v463 = vunpack.c.l.b16 %v298
        %v464 = vunpack.c.h.b16 %v298
        %v465 = vunpack.c.l.b16 %v299
        %v466 = vunpack.c.h.b16 %v299
        %v467 = vunpack.c.l.b16 %v300
        %v468 = vunpack.c.h.b16 %v300
        %v469 = vunpack.c.l.b16 %v301
        %v470 = vunpack.c.h.b16 %v301
        %v471 = vunpack.c.l.b16 %v302
        %v472 = vunpack.c.h.b16 %v302
        %v473 = vunpack.c.l.b16 %v303
        %v474 = vunpack.c.h.b16 %v303
        %v475 = vunpack.c.l.b16 %v304
        %v476 = vunpack.c.h.b16 %v304
        %v477 = vunpack.c.l.b16 %v305
        %v478 = vunpack.c.h.b16 %v305
        %v479 = vunpack.c.l.b16 %v306
        %v480 = vunpack.c.h.b16 %v306
        %v481 = vunpack.c.l.b16 %v307
        %v482 = vunpack.c.h.b16 %v307
        %v483 = vunpack.c.l.b16 %v308
        %v484 = vunpack.c.h.b16 %v308
        %v485 = vunpack.c.l.b16 %v309
        %v486 = vunpack.c.h.b16 %v309
        %v487 = vunpack.c.l.b16 %v310
        %v488 = vunpack.c.h.b16 %v310
        %v489 = vunpack.c.l.b16 %v311
        %v490 = vunpack.c.h.b16 %v311
        %v491 = vunpack.c.l.b16 %v312
        %v492 = vunpack.c.h.b16 %v312
        %v493 = vunpack.c.l.b16 %v313
        %v494 = vunpack.c.h.b16 %v313
        %v495 = vunpack.c.l.b16 %v314
        %v496 = vunpack.c.h.b16 %v314
        %v497 = vunpack.c.l.b16 %v315
        %v498 = vunpack.c.h.b16 %v315
        %v499 = vunpack.c.l.b16 %v316
        %v500 = vunpack.c.h.b16 %v316
        %v501 = vunpack.c.l.b16 %v317
        %v502 = vunpack.c.h.b16 %v317
        %v503 = vunpack.c.l.b16 %v318
        %v504 = vunpack.c.h.b16 %v318
        %v505 = vunpack.c.l.b16 %v319
        %v506 = vunpack.c.h.b16 %v319
        %v507 = vunpack.c.l.b16 %v320
        %v508 = vunpack.c.h.b16 %v320
        %v509 = vunpack.c.l.b16 %v321
        %v510 = vunpack.c.h.b16 %v321
        %v511 = vunpack.c.l.b16 %v322
        %v512 = vunpack.c.h.b16 %v322
        %v513 = vunpack.c.l.b16 %v323
        %v514 = vunpack.c.h.b16 %v323
        %v515 = vunpack.c.l.b16 %v324
        %v516 = vunpack.c.h.b16 %v324
        %v517 = vunpack.c.l.b16 %v325
        %v518 = vunpack.c.h.b16 %v325
        %v519 = vunpack.c.l.b16 %v326
        %v520 = vunpack.c.h.b16 %v326
        %v521 = vunpack.c.l.b16 %v327
        %v522 = vunpack.c.h.b16 %v327
        %v523 = vunpack.c.l.b16 %v328
        %v524 = vunpack.c.h.b16 %v328
        %v525 = vunpack.c.l.b16 %v329
        %v526 = vunpack.c.h.b16 %v329
        %v527 = vunpack.c.l.b16 %v330
        %v528 = vunpack.c.h.b16 %v330
        %v529 = vunpack.c.l.b16 %v331
        %v530 = vunpack.c.h.b16 %v331
        %v531 = vunpack.c.l.b16 %v332
        %v532 = vunpack.c.h.b16 %v332
        %v533 = vunpack.c.l.b16 %v333
        %v534 = vunpack.c.h.b16 %v333
        %v535 = vunpack.c.l.b16 %v334
        %v536 = vunpack.c.h.b16 %v334
        %v537 = vunpack.c.l.b16 %v335
        %v538 = vunpack.c.h.b16 %v335
        %v539 = vunpack.c.l.b16 %v336
        %v540 = vunpack.c.h.b16 %v336
        %v541 = vunpack.c.l.b16 %v337
        %v542 = vunpack.c.h.b16 %v337
        %v543 = vunpack.c.l.b16 %v338
        %v544 = vunpack.c.h.b16 %v338
        %v545 = vunpack.c.l.b16 %v339
        %v546 = vunpack.c.h.b16 %v339
        %v547 = vunpack.c.l.b16 %v340
        %v548 = vunpack.c.h.b16 %v340
        %v549 = vunpack.c.l.b16 %v341
        %v550 = vunpack.c.h.b16 %v341
        %v551 = vunpack.c.l.b16 %v342
        %v552 = vunpack.c.h.b16 %v342
        %v553 = vunpack.c.l.b16 %v343
        %v554 = vunpack.c.h.b16 %v343
        %v555 = vunpack.c.l.b16 %v344
        %v556 = vunpack.c.h.b16 %v344
        %v557 = vunpack.c.l.b16 %v345
        %v558 = vunpack.c.h.b16 %v345
        %v559 = vunpack.c.l.b16 %v346
        %v560 = vunpack.c.h.b16 %v346
        %v561 = vunpack.c.l.b16 %v347
        %v562 = vunpack.c.h.b16 %v347
        %v563 = vunpack.c.l.b16 %v348
        %v564 = vunpack.c.h.b16 %v348
        %v565 = vunpack.c.l.b16 %v349
        %v566 = vunpack.c.h.b16 %v349
        %v567 = vunpack.c.l.b16 %v350
        %v568 = vunpack.c.h.b16 %v350
        %v569 = vunpack.c.l.b16 %v351
        %v570 = vunpack.c.h.b16 %v351
        %v571 = vunpack.c.l.b16 %v352
        %v572 = vunpack.c.h.b16 %v352
        %v573 = vunpack.c.l.b16 %v353
        %v574 = vunpack.c.h.b16 %v353
        %v575 = vunpack.c.l.b16 %v354
        %v576 = vunpack.c.h.b16 %v354
        %v577 = vunpack.c.l.b16 %v355
        %v578 = vunpack.c.h.b16 %v355
        %v579 = vunpack.c.l.b16 %v356
        %v580 = vunpack.c.h.b16 %v356
        %v581 = vpack.c.b16 %v457, %v453
        %v582 = vpack.c.b16 %v458, %v454
        %v583 = vpack.c.b16 %v459, %v455
        %v584 = vpack.c.b16 %v460, %v456
        %v585 = vpack.c.b16 %v465, %v461
        %v586 = vpack.c.b16 %v466, %v462
        %v587 = vpack.c.b16 %v467, %v463
        %v588 = vpack.c.b16 %v468, %v464
        %v589 = vpack.c.b16 %v473, %v469
        %v590 = vpack.c.b16 %v474, %v470
        %v591 = vpack.c.b16 %v475, %v471
        %v592 = vpack.c.b16 %v476, %v472
        %v593 = vpack.c.b16 %v481, %v477
        %v594 = vpack.c.b16 %v482, %v478
        %v595 = vpack.c.b16 %v483, %v479
        %v596 = vpack.c.b16 %v484, %v480
        %v597 = vpack.c.b16 %v489, %v485
        %v598 = vpack.c.b16 %v490, %v486
        %v599 = vpack.c.b16 %v491, %v487
        %v600 = vpack.c.b16 %v492, %v488
        %v601 = vpack.c.b16 %v497, %v493
        %v602 = vpack.c.b16 %v498, %v494
        %v603 = vpack.c.b16 %v499, %v495
        %v604 = vpack.c.b16 %v500, %v496
        %v605 = vpack.c.b16 %v505, %v501
        %v606 = vpack.c.b16 %v506, %v502
        %v607 = vpack.c.b16 %v507, %v503
        %v608 = vpack.c.b16 %v508, %v504
        %v609 = vpack.c.b16 %v513, %v509
        %v610 = vpack.c.b16 %v514, %v510
        %v611 = vpack.c.b16 %v515, %v511
        %v612 = vpack.c.b16 %v516, %v512
        %v613 = vpack.c.b16 %v521, %v517
        %v614 = vpack.c.b16 %v522, %v518
        %v615 = vpack.c.b16 %v523, %v519
        %v616 = vpack.c.b16 %v524, %v520
        %v617 = vpack.c.b16 %v529, %v525
        %v618 = vpack.c.b16 %v530, %v526
        %v619 = vpack.c.b16 %v531, %v527
        %v620 = vpack.c.b16 %v532, %v528
        %v621 = vpack.c.b16 %v537, %v533
        %v622 = vpack.c.b16 %v538, %v534
        %v623 = vpack.c.b16 %v539, %v535
        %v624 = vpack.c.b16 %v540, %v536
        %v625 = vpack.c.b16 %v545, %v541
        %v626 = vpack.c.b16 %v546, %v542
        %v627 = vpack.c.b16 %v547, %v543
        %v628 = vpack.c.b16 %v548, %v544
        %v629 = vpack.c.b16 %v553, %v549
        %v630 = vpack.c.b16 %v554, %v550
        %v631 = vpack.c.b16 %v555, %v551
        %v632 = vpack.c.b16 %v556, %v552
        %v633 = vpack.c.b16 %v561, %v557
        %v634 = vpack.c.b16 %v562, %v558
        %v635 = vpack.c.b16 %v563, %v559
        %v636 = vpack.c.b16 %v564, %v560
        %v637 = vpack.c.b16 %v569, %v565
        %v638 = vpack.c.b16 %v570, %v566
        %v639 = vpack.c.b16 %v571, %v567
        %v640 = vpack.c.b16 %v572, %v568
        %v641 = vpack.c.b16 %v577, %v573
        %v642 = vpack.c.b16 %v578, %v574
        %v643 = vpack.c.b16 %v579, %v575
        %v644 = vpack.c.b16 %v580, %v576
        %709 = vmatprep.subr.bf16.mxu0 %v610
        %710 = vmatpush1.bf16.msra.mxu0 %v609
        %711 = vmatprep.subr.bf16.mxu0 %v606
        %712 = vmatpush1.bf16.msra.mxu0 %v605
        %713 = vmatprep.subr.bf16.mxu0 %v602
        %714 = vmatpush1.bf16.msra.mxu0 %v601
        %715 = vmatprep.subr.bf16.mxu0 %v598
        %716 = vmatpush1.bf16.msra.mxu0 %v597
        %717 = vmatprep.subr.bf16.mxu0 %v594
        %718 = vmatpush1.bf16.msra.mxu0 %v593
        %719 = vmatprep.subr.bf16.mxu0 %v590
        %720 = vmatpush1.bf16.msra.mxu0 %v589
        %721 = vmatprep.subr.bf16.mxu0 %v586
        %722 = vmatpush1.bf16.msra.mxu0 %v585
        %723 = vmatprep.subr.bf16.mxu0 %v582
        %724 = vmatpush1.bf16.msra.mxu0 %v581
        %725 = vmatprep.subr.bf16.mxu0 %v642
        %726 = vmatpush2.bf16.msra.mxu0 %v641
        %727 = vmatprep.subr.bf16.mxu0 %v638
        %728 = vmatpush2.bf16.msra.mxu0 %v637
        %729 = vmatprep.subr.bf16.mxu0 %v634
        %730 = vmatpush2.bf16.msra.mxu0 %v633
        %731 = vmatprep.subr.bf16.mxu0 %v630
        %732 = vmatpush2.bf16.msra.mxu0 %v629
        %733 = vmatprep.subr.bf16.mxu0 %v626
        %734 = vmatpush2.bf16.msra.mxu0 %v625
        %735 = vmatprep.subr.bf16.mxu0 %v622
        %736 = vmatpush2.bf16.msra.mxu0 %v621
        %737 = vmatprep.subr.bf16.mxu0 %v618
        %738 = vmatpush2.bf16.msra.mxu0 %v617
        %739 = vmatprep.subr.bf16.mxu0 %v614
        %740 = vmatpush2.bf16.msra.mxu0 %v613
        %741 = vmatprep.mubr.bf16.mxu0 %v386
        %742 = vmatmul.mubr.bf16.gmra.mxu0 %v385
        %v743 = vpop.f32.mrf.mxu0
        %v744 = vadd.f32 %v362, %v743
        %v745 = vpop.f32.mrf.mxu0
        %v746 = vadd.f32 %v366, %v745
        %v747 = vpop.f32.mrf.mxu0
        %v748 = vadd.f32 %v362, %v747
        %v749 = vpop.f32.mrf.mxu0
        %v750 = vadd.f32 %v366, %v749
        %751 = vdwg.mxu0
        %752 = vmatprep.subr.bf16.mxu0 %v612
        %753 = vmatpush1.bf16.msra.mxu0 %v611
        %754 = vmatprep.subr.bf16.mxu0 %v608
        %755 = vmatpush1.bf16.msra.mxu0 %v607
        %756 = vmatprep.subr.bf16.mxu0 %v604
        %757 = vmatpush1.bf16.msra.mxu0 %v603
        %758 = vmatprep.subr.bf16.mxu0 %v600
        %759 = vmatpush1.bf16.msra.mxu0 %v599
        %760 = vmatprep.subr.bf16.mxu0 %v596
        %761 = vmatpush1.bf16.msra.mxu0 %v595
        %762 = vmatprep.subr.bf16.mxu0 %v592
        %763 = vmatpush1.bf16.msra.mxu0 %v591
        %764 = vmatprep.subr.bf16.mxu0 %v588
        %765 = vmatpush1.bf16.msra.mxu0 %v587
        %766 = vmatprep.subr.bf16.mxu0 %v584
        %767 = vmatpush1.bf16.msra.mxu0 %v583
        %768 = vmatprep.subr.bf16.mxu0 %v644
        %769 = vmatpush2.bf16.msra.mxu0 %v643
        %770 = vmatprep.subr.bf16.mxu0 %v640
        %771 = vmatpush2.bf16.msra.mxu0 %v639
        %772 = vmatprep.subr.bf16.mxu0 %v636
        %773 = vmatpush2.bf16.msra.mxu0 %v635
        %774 = vmatprep.subr.bf16.mxu0 %v632
        %775 = vmatpush2.bf16.msra.mxu0 %v631
        %776 = vmatprep.subr.bf16.mxu0 %v628
        %777 = vmatpush2.bf16.msra.mxu0 %v627
        %778 = vmatprep.subr.bf16.mxu0 %v624
        %779 = vmatpush2.bf16.msra.mxu0 %v623
        %780 = vmatprep.subr.bf16.mxu0 %v620
        %781 = vmatpush2.bf16.msra.mxu0 %v619
        %782 = vmatprep.subr.bf16.mxu0 %v616
        %783 = vmatpush2.bf16.msra.mxu0 %v615
        %784 = vmatprep.mubr.bf16.mxu0 %v386
        %785 = vmatmul.mubr.bf16.gmra.mxu0 %v385
        %v786 = vpop.f32.mrf.mxu0
        %v787 = vadd.f32 %v370, %v786
        %v788 = vpop.f32.mrf.mxu0
        %v789 = vadd.f32 %v374, %v788
        %v790 = vpop.f32.mrf.mxu0
        %v791 = vadd.f32 %v370, %v790
        %v792 = vpop.f32.mrf.mxu0
        %v793 = vadd.f32 %v374, %v792
        %794 = vdwg.mxu0
        %v795 = vpack.c.bf16 %v748, %v744
        %v796 = vpack.c.bf16 %v750, %v746
        %v797 = vpack.c.bf16 %v791, %v787
        %v798 = vpack.c.bf16 %v793, %v789
        %v803 = vunpack.c.l.b16 %v795
        %v804 = vunpack.c.l.b16 %v796
        %v805 = vunpack.c.l.b16 %v797
        %v806 = vunpack.c.l.b16 %v798
        %v807 = vunpack.c.h.b16 %v795
        %v808 = vunpack.c.h.b16 %v796
        %v809 = vunpack.c.h.b16 %v797
        %v810 = vunpack.c.h.b16 %v798
        %v811 = vpack.c.b16 %v804, %v803
        %v812 = vpack.c.b16 %v806, %v805
        %v813 = vpack.c.b16 %v808, %v807
        %v814 = vpack.c.b16 %v810, %v809
        %819 = vst [vmem:[%s274] sm:$0xff] %v811
        %820 = vst [vmem:[%s274 + $0x8] sm:$0xff] %v812
        %821 = vst [vmem:[%s274 + $0x10] sm:$0xff] %v813
        %822 = vst [vmem:[%s274 + $0x18] sm:$0xff] %v814
        %v823 = vadd.f32 %v744, %v748
        %v824 = vrot.slane %v823, 4
        %v825 = vadd.f32 %v823, %v824
        %v826 = vrot.slane %v825, 2
        %v827 = vadd.f32 %v825, %v826
        %v828 = vrot.slane %v827, 1
        %v829 = vadd.f32 %v827, %v828
        %v830 = vadd.f32 %v746, %v750
        %v831 = vrot.slane %v830, 4
        %v832 = vadd.f32 %v830, %v831
        %v833 = vrot.slane %v832, 2
        %v834 = vadd.f32 %v832, %v833
        %v835 = vrot.slane %v834, 1
        %v836 = vadd.f32 %v834, %v835
        %v837 = vadd.f32 %v787, %v791
        %v838 = vrot.slane %v837, 4
        %v839 = vadd.f32 %v837, %v838
        %v840 = vrot.slane %v839, 2
        %v841 = vadd.f32 %v839, %v840
        %v842 = vrot.slane %v841, 1
        %v843 = vadd.f32 %v841, %v842
        %v844 = vadd.f32 %v789, %v793
        %v845 = vrot.slane %v844, 4
        %v846 = vadd.f32 %v844, %v845
        %v847 = vrot.slane %v846, 2
        %v848 = vadd.f32 %v846, %v847
        %v849 = vrot.slane %v848, 1
        %v850 = vadd.f32 %v848, %v849
        %v855 = vcombine.low %v829, %v836
        %v856 = vcombine.low %v843, %v850
        %v858 = vunpack.c.l.s4 1966171168
        %v859 = vunpack.c.0.s8 %v858
        %v860 = vlaneseq
        %v861 = vshrl.u32 %v860, 7
        %v862 = vsub.s32 %v859, %v861
        %v863 = vrot.slane %v855, %v862
        %v865 = vunpack.c.l.s4 1966171168
        %v866 = vunpack.c.0.s8 %v865
        %v867 = vlaneseq
        %v868 = vshrl.u32 %v867, 7
        %v869 = vsub.s32 %v866, %v868
        %v870 = vrot.slane %v856, %v869
        %v871 = vcombine.low %v863, %v870
        %v873 = vunpack.c.l.s4 1966171168
        %v874 = vunpack.c.0.s8 %v873
        %v875 = vlaneseq
        %v876 = vshrl.u32 %v875, 7
        %v877 = vsub.s32 %v874, %v876
        %v878 = vrot.slane %v871, %v877
        %v880 = vlaneseq
        %vm881 = vcmp.ge.s32.totalorder %v880, 0
        %vm882 = vcmp.lt.s32.totalorder %v880, 512
        %vm883 = vmand %vm881, %vm882
        %884 = vst.msk [vmem:[%s281] sm:$0xf] %vm883, %v878
        %v885 = vmul.f32 %v744, %v744
        %v886 = vmul.f32 %v746, %v746
        %v887 = vmul.f32 %v787, %v787
        %v888 = vmul.f32 %v789, %v789
        %v889 = vmul.f32 %v748, %v748
        %v890 = vmul.f32 %v750, %v750
        %v891 = vmul.f32 %v791, %v791
        %v892 = vmul.f32 %v793, %v793
        %v893 = vadd.f32 %v885, %v889
        %v894 = vrot.slane %v893, 4
        %v895 = vadd.f32 %v893, %v894
        %v896 = vrot.slane %v895, 2
        %v897 = vadd.f32 %v895, %v896
        %v898 = vrot.slane %v897, 1
        %v899 = vadd.f32 %v897, %v898
        %v900 = vadd.f32 %v886, %v890
        %v901 = vrot.slane %v900, 4
        %v902 = vadd.f32 %v900, %v901
        %v903 = vrot.slane %v902, 2
        %v904 = vadd.f32 %v902, %v903
        %v905 = vrot.slane %v904, 1
        %v906 = vadd.f32 %v904, %v905
        %v907 = vadd.f32 %v887, %v891
        %v908 = vrot.slane %v907, 4
        %v909 = vadd.f32 %v907, %v908
        %v910 = vrot.slane %v909, 2
        %v911 = vadd.f32 %v909, %v910
        %v912 = vrot.slane %v911, 1
        %v913 = vadd.f32 %v911, %v912
        %v914 = vadd.f32 %v888, %v892
        %v915 = vrot.slane %v914, 4
        %v916 = vadd.f32 %v914, %v915
        %v917 = vrot.slane %v916, 2
        %v918 = vadd.f32 %v916, %v917
        %v919 = vrot.slane %v918, 1
        %v920 = vadd.f32 %v918, %v919
        %v925 = vcombine.low %v899, %v906
        %v926 = vcombine.low %v913, %v920
        %v928 = vunpack.c.l.s4 1966171168
        %v929 = vunpack.c.0.s8 %v928
        %v930 = vlaneseq
        %v931 = vshrl.u32 %v930, 7
        %v932 = vsub.s32 %v929, %v931
        %v933 = vrot.slane %v925, %v932
        %v935 = vunpack.c.l.s4 1966171168
        %v936 = vunpack.c.0.s8 %v935
        %v937 = vlaneseq
        %v938 = vshrl.u32 %v937, 7
        %v939 = vsub.s32 %v936, %v938
        %v940 = vrot.slane %v926, %v939
        %v941 = vcombine.low %v933, %v940
        %v943 = vunpack.c.l.s4 1966171168
        %v944 = vunpack.c.0.s8 %v943
        %v945 = vlaneseq
        %v946 = vshrl.u32 %v945, 7
        %v947 = vsub.s32 %v944, %v946
        %v948 = vrot.slane %v941, %v947
        %950 = vst.msk [vmem:[%s288] sm:$0xf] %vm883, %v948
        %s951 = sand.u32 %s103, 1
        %s952 = scalar_lea.sflag [#allocation4], %s951
        %s953 = sand.u32 %s103, 1
        %s954 = smul.addr %s953, 32
        %s955 = scalar_lea.vmem [#allocation8], %s954
        %s956 = sand.u32 %s27, 1
        %s957 = scalar_lea.sflag [#allocation10], %s956
        %s958 = sand.u32 %s129, 1
        %s959 = smul.addr %s958, 4
        %s960 = scalar_lea.vmem [#allocation9], %s959
        %s961 = sand.u32 %s27, 1
        %s962 = scalar_lea.sflag [#allocation10], %s961
        %s963 = sand.u32 %s155, 1
        %s964 = smul.addr %s963, 4
        %s965 = scalar_lea.vmem [#allocation11], %s964
        // Predicated region
        $region45: #{tpu_custom_call.1} parent=31 // pred_check
          %p966 = pneg %p113
        $region46: #{tpu_custom_call.1} parent=31 // pred_check_branch
          %968 = sbr.rel (%p966) target = $region48
        $region47: #{tpu_custom_call.1} parent=31 // pred_region
          %s969 = smul.u32 2, %s27
          %s971 = ssub.s32 512, 512
          %972 = vsyncadd %s952, %s971
          %s973 = smul.addr %s969, 4
          %s974 = smul.addr %s973, 64
          %s975 = scalar_lea.hbm %s3, %s974
          %s976 = sshll.u32 %s955, 4
          %s977 = int_to_ptr.vmem [resolvable:$true] %s976
          %982 = dma.vmem_to_hbm [thread:$0]  %s977, 512, %s975, %s952, 256, 256, 16
        $region48: #{tpu_custom_call.1} parent=31 // pred_fallthru
          _
        // Predicated region
        $region49: #{tpu_custom_call.1} parent=31 // pred_check
          %p983 = pneg %p139
        $region50: #{tpu_custom_call.1} parent=31 // pred_check_branch
          %985 = sbr.rel (%p983) target = $region52
        $region51: #{tpu_custom_call.1} parent=31 // pred_region
          %s987 = ssub.s32 64, 64
          %988 = vsyncadd %s957, %s987
          %s989 = smul.addr %s27, 4
          %s990 = smul.addr %s989, 16
          %s991 = scalar_lea.hbm %s4, %s990
          %s993 = sshll.u32 %s960, 4
          %s994 = int_to_ptr.vmem [resolvable:$true] %s993
          %996 = dma.vmem_to_hbm [thread:$0]  %s994, 64, %s991, %s957
        $region52: #{tpu_custom_call.1} parent=31 // pred_fallthru
          _
        // Predicated region
        $region53: #{tpu_custom_call.1} parent=31 // pred_check
          %p997 = pneg %p165
        $region54: #{tpu_custom_call.1} parent=31 // pred_check_branch
          %999 = sbr.rel (%p997) target = $region56
        $region55: #{tpu_custom_call.1} parent=31 // pred_region
          %s1001 = ssub.s32 64, 64
          %1002 = vsyncadd %s962, %s1001
          %s1003 = smul.addr %s27, 4
          %s1004 = smul.addr %s1003, 16
          %s1005 = scalar_lea.hbm %s5, %s1004
          %s1007 = sshll.u32 %s965, 4
          %s1008 = int_to_ptr.vmem [resolvable:$true] %s1007
          %1010 = dma.vmem_to_hbm [thread:$0]  %s1008, 64, %s1005, %s962
        $region56: #{tpu_custom_call.1} parent=31 // pred_fallthru
          _
      $region32: #{tpu_custom_call.1} parent=5 // pred_fallthru
        _
      %p1011 = scmp.le.s32.totalorder 2, %s22
      // Predicated region
      $region57: #{tpu_custom_call.1} parent=5 // pred_check
        %p1012 = pneg %p1011
      $region58: #{tpu_custom_call.1} parent=5 // pred_check_branch
        %1014 = sbr.rel (%p1012) target = $region60
      $region59: #{tpu_custom_call.1} parent=5 // pred_region
        %s1015 = ssub.s32 %s22, 2
        // Predicated region
        $region61: #{tpu_custom_call.1} parent=59 // pred_check
          %p1016 = pneg %p119
        $region62: #{tpu_custom_call.1} parent=59 // pred_check_branch
          %1018 = sbr.rel (%p1016) target = $region64
        $region63: #{tpu_custom_call.1} parent=59 // pred_region
          %s1019 = sand.u32 %s104, 1
          %s1020 = scalar_lea.sflag [#allocation4], %s1019
          %s1021 = sand.u32 %s104, 1
          %s1022 = smul.addr %s1021, 32
          %s1023 = scalar_lea.vmem [#allocation8], %s1022
          %1024 = dma.done %s1020, 512
        $region64: #{tpu_custom_call.1} parent=59 // pred_fallthru
          _
        // Predicated region
        $region65: #{tpu_custom_call.1} parent=59 // pred_check
          %p1025 = pneg %p145
        $region66: #{tpu_custom_call.1} parent=59 // pred_check_branch
          %1027 = sbr.rel (%p1025) target = $region68
        $region67: #{tpu_custom_call.1} parent=59 // pred_region
          %s1028 = sand.u32 %s28, 1
          %s1029 = scalar_lea.sflag [#allocation10], %s1028
          %s1030 = sand.u32 %s130, 1
          %s1031 = smul.addr %s1030, 4
          %s1032 = scalar_lea.vmem [#allocation9], %s1031
          %1033 = dma.done %s1029, 64
        $region68: #{tpu_custom_call.1} parent=59 // pred_fallthru
          _
        // Predicated region
        $region69: #{tpu_custom_call.1} parent=59 // pred_check
          %p1034 = pneg %p171
        $region70: #{tpu_custom_call.1} parent=59 // pred_check_branch
          %1036 = sbr.rel (%p1034) target = $region72
        $region71: #{tpu_custom_call.1} parent=59 // pred_region
          %s1037 = sand.u32 %s28, 1
          %s1038 = scalar_lea.sflag [#allocation10], %s1037
          %s1039 = sand.u32 %s156, 1
          %s1040 = smul.addr %s1039, 4
          %s1041 = scalar_lea.vmem [#allocation11], %s1040
          %1042 = dma.done %s1038, 64
        $region72: #{tpu_custom_call.1} parent=59 // pred_fallthru
          _
      $region60: #{tpu_custom_call.1} parent=5 // pred_fallthru
        _
    $region6: #{tpu_custom_call.1} parent=1 // loop_footer
      %s26 = sadd.s32 1, %s22
    $region7: #{tpu_custom_call.1} parent=1 // loop_footer_branch
      %21 = sbr.rel target = $region3
    $region8: #{tpu_custom_call.1} parent=1 // loop_exit
      _
    %1043 = vsyncpa [#allocation3], 1
    %s1044 = scalar_lea.sflag [#allocation3], 1
    %1045 = vsyncpa %s1044, 1
    %1046 = vsyncpa [#allocation6], 1
    %1047 = vsyncpa [#allocation4], 1
    %s1048 = scalar_lea.sflag [#allocation4], 1
    %1049 = vsyncpa %s1048, 1
    %1050 = vsyncpa [#allocation10], 1
    %s1051 = scalar_lea.sflag [#allocation10], 1
    %1052 = vsyncpa %s1051, 1

</llo_original>
